<compile_context>
chip_gen: v6e
topology: v6e:2x2x1
jax: 0.10.0
libtpu: 0.0.40
codegen_flags: <defaults>
</compile_context>

<pallas_src>
import functools
import math

import jax
import jax.numpy as jnp
from jax.experimental import pallas as pl
from jax.experimental.pallas import tpu as pltpu


def _round_up(x, m):
    return (x + m - 1) // m * m


def _cdiv(a, b):
    return -(-a // b)


def _arc_fc_kernel(x_ref, xinv_ref, w_ref, lab_ref, o_ref, wn_ref, *,
                   s, s_cos_m, s_sin_m, th, s_mm, easy_margin, x_resident):
    """One (batch-tile, class-tile) block of the ArcFace margin head."""
    c = pl.program_id(0)          # class-tile index (outer, "parallel")
    b = pl.program_id(1)          # batch-tile index (inner, "arbitrary")
    TB, TC = o_ref.shape

    # The weight tile is resident across the whole inner batch loop (its block
    # index depends only on c), so unit-normalize it once per class tile and
    # cache the result in bf16: the matmul then runs at bf16 MXU rate with
    # f32 accumulation.
    @pl.when(b == 0)
    def _():
        wf = w_ref[...].astype(jnp.float32)                          # (TC, D)
        w_inv = jax.lax.rsqrt(
            jnp.maximum(jnp.sum(wf * wf, axis=-1, keepdims=True), 1e-24))
        wn_ref[...] = (wf * w_inv).astype(wn_ref.dtype)              # bf16

    row0 = pl.multiple_of(b * TB, TB)
    x = x_ref[pl.ds(row0, TB), :] if x_resident else x_ref[...]     # (TB,D) bf16
    x_inv = xinv_ref[pl.ds(row0, TB), :]                            # (TB,1) f32
    labels = lab_ref[pl.ds(row0, TB), :]                            # (TB,1) i32

    # MXU matmul, contracting the feature axis of both operands (no in-kernel
    # transpose / relayout of the weight tile); bf16 operands, f32 accumulate.
    logits = jax.lax.dot_general(
        x, wn_ref[...], (((1,), (1,)), ((), ())),
        preferred_element_type=jnp.float32)                         # (TB, TC)
    cosine = logits * x_inv   # rows scaled by 1/||x||; weights already unit-norm

    # ArcFace margin math in f32; the final *s is folded into the constants.
    sine = jnp.sqrt(jnp.clip(1.000001 - cosine * cosine, 0.0, 1.0))
    cos_s = cosine * s
    phi_s = cosine * s_cos_m - sine * s_sin_m
    if easy_margin:
        phi_s = jnp.where(cosine > 0.0, phi_s, cos_s)
    else:
        phi_s = jnp.where(cosine > th, phi_s, cos_s - s_mm)

    # Single select on the label column (global class index of this C tile).
    col = jax.lax.broadcasted_iota(jnp.int32, cosine.shape, 1) + c * TC
    o_ref[...] = jnp.where(col == labels, phi_s, cos_s).astype(o_ref.dtype)


def _vmem_limit_bytes(TB, TC, D, B_pad, w_itemsize, out_itemsize, x_resident):
    """Tight, computed VMEM limit (review: no blanket 48 MiB; v7x has 64 MiB)."""
    w_io = 2 * TC * D * w_itemsize               # double-buffered weight stream
    wn_scratch = TC * D * 2                      # bf16 normalized-weight cache
    out_io = 2 * TB * TC * out_itemsize          # double-buffered output blocks
    x_io = 2 * (B_pad if x_resident else TB) * D * 2        # bf16 activations
    small = 2 * 2 * B_pad * 128 * 4              # labels + 1/||x|| (lane-padded)
    epilogue = 6 * TB * TC * 4                   # f32 temporaries of margin math
    need = w_io + wn_scratch + out_io + x_io + small + epilogue
    limit = max(need + (8 << 20), 16 << 20)
    try:
        phys = getattr(pltpu.get_tpu_info(), "vmem_capacity_bytes", None)
        if phys:
            limit = min(limit, int(phys) - (8 << 20))
    except Exception:
        limit = min(limit, 96 << 20)
    return int(limit)


def arc_fc_forward(inputs, weights, labels, *, s=60.0, m=0.3,
                   easy_margin=False, block_b=256, block_c=2048,
                   out_dtype=jnp.float32):
    """ArcFace fully-connected head forward, matching nn20 Arc_fc."""
    B, D = inputs.shape
    C, D2 = weights.shape
    assert D == D2, (D, D2)
    assert labels.shape == (B,), labels.shape

    # ---- tile selection ----------------------------------------------------
    # Batch tile: multiple of 8 (sublanes). Class tile: multiple of 128 (lanes).
    TB = min(block_b, _round_up(B, 8))
    CR = _round_up(C, 128)
    TC = min(block_c, CR)
    # Keep >= 4 class tiles when that doesn't force tiny tiles, so the
    # "parallel" class axis load-balances across v7x's two TensorCores.
    while TC > 512 and _cdiv(CR, TC) < 4:
        TC = _round_up(TC // 2, 128)
    B_pad = _round_up(B, TB)
    C_pad = _round_up(C, TC)

    # ---- wrapper-side prep (all O(B*D) or smaller, done once) ---------------
    xf = inputs.astype(jnp.float32)
    x_inv = jax.lax.rsqrt(
        jnp.maximum(jnp.sum(xf * xf, axis=1, keepdims=True), 1e-24))  # (B,1) f32
    x_bf = inputs.astype(jnp.bfloat16)                                # MXU operand
    lab = labels.astype(jnp.int32).reshape(B, 1)

    if B_pad != B:
        pad = ((0, B_pad - B), (0, 0))
        x_bf = jnp.pad(x_bf, pad)
        x_inv = jnp.pad(x_inv, pad)
        lab = jnp.pad(lab, pad)
    w_p = weights if C_pad == C else jnp.pad(weights, ((0, C_pad - C), (0, 0)))

    # Keep the whole activation slab resident in VMEM unless it is large
    # (v7x has only 64 MiB per core); labels and 1/||x|| are always resident.
    x_resident = (B_pad * D * 2) <= (16 << 20)
    if x_resident:
        x_spec = pl.BlockSpec((B_pad, D), lambda c, b: (0, 0))
    else:
        x_spec = pl.BlockSpec((TB, D), lambda c, b: (b, 0))

    grid = (C_pad // TC, B_pad // TB)   # class tiles outer, batch tiles inner

    kernel = functools.partial(
        _arc_fc_kernel,
        s=float(s),
        s_cos_m=float(s) * math.cos(m),
        s_sin_m=float(s) * math.sin(m),
        th=math.cos(math.pi - m),
        s_mm=float(s) * math.sin(math.pi - m) * m,
        easy_margin=bool(easy_margin),
        x_resident=x_resident,
    )

    vmem_limit = _vmem_limit_bytes(
        TB, TC, D, B_pad, weights.dtype.itemsize,
        jnp.dtype(out_dtype).itemsize, x_resident)

    out = pl.pallas_call(
        kernel,
        out_shape=jax.ShapeDtypeStruct((B_pad, C_pad), out_dtype),
        grid_spec=pltpu.PrefetchScalarGridSpec(
            num_scalar_prefetch=0,
            grid=grid,
            in_specs=[
                # activations (bf16): whole-array resident (fetched once) or
                # per-batch-tile streamed when too big for VMEM residency.
                x_spec,
                # 1/||x|| (f32) and labels (i32): tiny, whole-array resident.
                pl.BlockSpec((B_pad, 1), lambda c, b: (0, 0)),
                # weights: block index depends only on the class tile -> the
                # re-DMA is skipped across the inner batch loop (each weight
                # tile is read from HBM exactly once).
                pl.BlockSpec((TC, D), lambda c, b: (c, 0)),
                pl.BlockSpec((B_pad, 1), lambda c, b: (0, 0)),
            ],
            out_specs=pl.BlockSpec((TB, TC), lambda c, b: (b, c)),
            # cache for the unit-normalized weight tile in bf16 (MXU dtype)
            scratch_shapes=[pltpu.VMEM((TC, D), jnp.bfloat16)],
        ),
        compiler_params=pltpu.CompilerParams(
            dimension_semantics=("parallel", "arbitrary"),
            vmem_limit_bytes=vmem_limit,
        ),
    )(x_bf, x_inv, w_p, lab)

    return out[:B, :C]


def arc_fc_reference(inputs, weights, labels, *, s=60.0, m=0.3,
                     easy_margin=False):
    """Pure-JAX f32 reference mirroring the PyTorch forward."""
    cos_m, sin_m = math.cos(m), math.sin(m)
    th, mm = math.cos(math.pi - m), math.sin(math.pi - m) * m
    xn = inputs / jnp.maximum(
        jnp.linalg.norm(inputs, axis=1, keepdims=True), 1e-12)
    wn = weights / jnp.maximum(
        jnp.linalg.norm(weights, axis=1, keepdims=True), 1e-12)
    cosine = xn @ wn.T
    sine = jnp.sqrt(jnp.clip(1.000001 - cosine ** 2, 0.0, 1.0))
    phi = cosine * cos_m - sine * sin_m
    if easy_margin:
        phi = jnp.where(cosine > 0.0, phi, cosine)
    else:
        phi = jnp.where(cosine > th, phi, cosine - mm)
    one_hot = jax.nn.one_hot(labels, weights.shape[0], dtype=jnp.float32)
    return (one_hot * phi + (1.0 - one_hot) * cosine) * s


def _check_arcface(out, x, w, labels, *, s, m, easy_margin,
                   rtol=5e-3, atol_scale=1e-2, branch_eps=1e-2):
    """Compare against the f32 reference; tolerate a margin-branch flip at
    label positions whose cosine sits within branch_eps of the threshold
    (expected consequence of the bf16 matmul)."""
    cos_m, sin_m = math.cos(m), math.sin(m)
    th, mm = math.cos(math.pi - m), math.sin(math.pi - m) * m
    xn = x / jnp.maximum(jnp.linalg.norm(x, axis=1, keepdims=True), 1e-12)
    wn = w / jnp.maximum(jnp.linalg.norm(w, axis=1, keepdims=True), 1e-12)
    cosine = xn @ wn.T
    sine = jnp.sqrt(jnp.clip(1.000001 - cosine ** 2, 0.0, 1.0))
    phi = cosine * cos_m - sine * sin_m
    thr = 0.0 if easy_margin else th
    other = cosine if easy_margin else cosine - mm
    onehot = labels[:, None] == jnp.arange(w.shape[0])[None, :]
    ref = jnp.where(onehot, jnp.where(cosine > thr, phi, other), cosine) * s
    ref_flip = jnp.where(onehot, jnp.where(cosine > thr, other, phi), cosine) * s

    atol = atol_scale * float(s)
    ok = jnp.abs(out - ref) <= atol + rtol * jnp.abs(ref)
    near = onehot & (jnp.abs(cosine - thr) < branch_eps)
    ok_flip = near & (jnp.abs(out - ref_flip) <= atol + rtol * jnp.abs(ref_flip))
    good = ok | ok_flip
    if not bool(jnp.all(good)):
        raise AssertionError(
            "ArcFace mismatch: max abs err vs f32 ref = "
            f"{float(jnp.max(jnp.abs(out - ref)))}")


if __name__ == "__main__":
    key = jax.random.PRNGKey(0)

    def make_case(k, B, D, C):
        k_x, k_w, k_l = jax.random.split(k, 3)
        bound = math.sqrt(6.0 / (D + C))   # deterministic xavier_uniform_
        w = jax.random.uniform(k_w, (C, D), jnp.float32, -bound, bound)
        x = jax.random.normal(k_x, (B, D), jnp.float32)
        lab = jax.random.randint(k_l, (B,), 0, C, jnp.int32)
        return x, w, lab

    k1, k2, k3 = jax.random.split(key, 3)

    # Case 1: single-tile path (C padded up to one 128-wide class tile).
    x, w, lab = make_case(k1, B=8, D=32, C=16)
    out = jax.block_until_ready(arc_fc_forward(x, w, lab, s=60.0, m=0.3))
    assert out.shape == (8, 16)
    _check_arcface(out, x, w, lab, s=60.0, m=0.3, easy_margin=False)

    # Case 2: multi-tile grid (3 class x 3 batch tiles), padding on both axes,
    # easy_margin branch, weight-tile reuse across the inner batch loop.
    x, w, lab = make_case(k2, B=24, D=32, C=300)
    out = jax.block_until_ready(
        arc_fc_forward(x, w, lab, s=30.0, m=0.5, easy_margin=True,
                       block_b=8, block_c=128))
    assert out.shape == (24, 300)
    _check_arcface(out, x, w, lab, s=30.0, m=0.5, easy_margin=True)

    # Case 3: default tiles; exercises the class-tile-count heuristic
    # (C=1000 -> TC shrinks from 1024 to 512, two class tiles).
    x, w, lab = make_case(k3, B=32, D=64, C=1000)
    out = jax.block_until_ready(arc_fc_forward(x, w, lab, s=60.0, m=0.3))
    assert out.shape == (32, 1000)
    _check_arcface(out, x, w, lab, s=60.0, m=0.3, easy_margin=False)

    print("KERNEL_OK")
</pallas_src>

<mosaic_0001>
module attributes {stable_mosaic.version = 11 : i64} {
  func.func @_arc_fc_kernel(%arg0: i32, %arg1: i32, %arg2: memref<8x32xbf16, #tpu.memory_space<vmem>>, %arg3: memref<8x1xf32, #tpu.memory_space<vmem>>, %arg4: memref<128x32xf32, #tpu.memory_space<vmem>>, %arg5: memref<8x1xi32, #tpu.memory_space<vmem>>, %arg6: memref<8x128xf32, #tpu.memory_space<vmem>>, %arg7: memref<128x32xbf16, #tpu.memory_space<vmem>>) attributes {dimension_semantics = [#tpu.dimension_semantics<parallel>, #tpu.dimension_semantics<arbitrary>], iteration_bounds = array<i64: 1, 1>, scalar_prefetch = 0 : i64, scratch_operands = 1 : i64, tpu.core_type = #tpu.core_type<tc>, window_params = [{pipeline_mode = #tpu.pipeline_mode<synchronous>, transform_indices = @transform_0, window_bounds = array<i64: 8, 32>}, {pipeline_mode = #tpu.pipeline_mode<synchronous>, transform_indices = @transform_1, window_bounds = array<i64: 8, 1>}, {transform_indices = @transform_2, window_bounds = array<i64: 128, 32>}, {pipeline_mode = #tpu.pipeline_mode<synchronous>, transform_indices = @transform_3, window_bounds = array<i64: 8, 1>}, {transform_indices = @transform_4, window_bounds = array<i64: 8, 128>}]} {
    %c0_i32 = arith.constant 0 : i32
    %0 = arith.cmpi eq, %arg1, %c0_i32 : i32
    %1 = arith.extui %0 : i1 to i32
    %c0_i32_0 = arith.constant 0 : i32
    %2 = arith.cmpi ne, %1, %c0_i32_0 : i32
    scf.if %2 {
      %c0_15 = arith.constant 0 : index
      %c0_16 = arith.constant 0 : index
      %43 = vector.load %arg4[%c0_15, %c0_16] : memref<128x32xf32, #tpu.memory_space<vmem>>, vector<128x32xf32>
      %44 = arith.mulf %43, %43 : vector<128x32xf32>
      %cst_17 = arith.constant dense<0.000000e+00> : vector<128xf32>
      %45 = vector.multi_reduction <add>, %44, %cst_17 [1] : vector<128x32xf32> to vector<128xf32>
      %46 = vector.shape_cast %45 : vector<128xf32> to vector<128x1xf32>
      %cst_18 = arith.constant 1.000000e-24 : f32
      %47 = vector.broadcast %cst_18 : f32 to vector<128x1xf32>
      %48 = arith.maximumf %46, %47 : vector<128x1xf32>
      %49 = math.rsqrt %48 : vector<128x1xf32>
      %50 = vector.broadcast %49 : vector<128x1xf32> to vector<128x32xf32>
      %51 = arith.mulf %43, %50 : vector<128x32xf32>
      %52 = arith.truncf %51 : vector<128x32xf32> to vector<128x32xbf16>
      %c0_19 = arith.constant 0 : index
      %c0_20 = arith.constant 0 : index
      %53 = vector.load %arg7[%c0_19, %c0_20] : memref<128x32xbf16, #tpu.memory_space<vmem>>, vector<128x32xbf16>
      tpu.vector_store %arg7[%c0_19, %c0_20], %52 {strides = array<i32>} : memref<128x32xbf16, #tpu.memory_space<vmem>>, vector<128x32xbf16>,
    } else {
    }
    %c8_i32 = arith.constant 8 : i32
    %3 = arith.muli %arg1, %c8_i32 : i32
    %4 = tpu.assume_multiple %3, 8 : i32
    %5 = arith.index_cast %4 : i32 to index
    %c0 = arith.constant 0 : index
    %6 = vector.load %arg2[%5, %c0] : memref<8x32xbf16, #tpu.memory_space<vmem>>, vector<8x32xbf16>
    %7 = arith.index_cast %4 : i32 to index
    %c0_1 = arith.constant 0 : index
    %8 = vector.load %arg3[%7, %c0_1] : memref<8x1xf32, #tpu.memory_space<vmem>>, vector<8x1xf32>
    %9 = arith.index_cast %4 : i32 to index
    %c0_2 = arith.constant 0 : index
    %10 = vector.load %arg5[%9, %c0_2] : memref<8x1xi32, #tpu.memory_space<vmem>>, vector<8x1xi32>
    %c0_3 = arith.constant 0 : index
    %c0_4 = arith.constant 0 : index
    %11 = vector.load %arg7[%c0_3, %c0_4] : memref<128x32xbf16, #tpu.memory_space<vmem>>, vector<128x32xbf16>
    %cst = arith.constant dense<0.000000e+00> : vector<8x128xf32>
    %12 = tpu.matmul %6, %11, %cst {dimension_numbers = #tpu.dot_dimension_numbers<[1], [1], [0], [0], [0, 0, 1, 0], [], []>} : vector<8x32xbf16>, vector<128x32xbf16>, vector<8x128xf32> -> vector<8x128xf32>
    %13 = vector.broadcast %8 : vector<8x1xf32> to vector<8x128xf32>
    %14 = arith.mulf %12, %13 : vector<8x128xf32>
    %15 = arith.mulf %14, %14 : vector<8x128xf32>
    %cst_5 = arith.constant 1.00000095 : f32
    %16 = vector.broadcast %cst_5 : f32 to vector<8x128xf32>
    %17 = arith.subf %16, %15 : vector<8x128xf32>
    %cst_6 = arith.constant 0.000000e+00 : f32
    %cst_7 = arith.constant 1.000000e+00 : f32
    %18 = vector.broadcast %cst_6 : f32 to vector<8x128xf32>
    %19 = arith.maximumf %18, %17 : vector<8x128xf32>
    %20 = vector.broadcast %cst_7 : f32 to vector<8x128xf32>
    %21 = arith.minimumf %20, %19 : vector<8x128xf32>
    %22 = math.sqrt %21 : vector<8x128xf32>
    %cst_8 = arith.constant 6.000000e+01 : f32
    %23 = vector.broadcast %cst_8 : f32 to vector<8x128xf32>
    %24 = arith.mulf %14, %23 : vector<8x128xf32>
    %cst_9 = arith.constant 57.3201904 : f32
    %25 = vector.broadcast %cst_9 : f32 to vector<8x128xf32>
    %26 = arith.mulf %14, %25 : vector<8x128xf32>
    %cst_10 = arith.constant 17.7312126 : f32
    %27 = vector.broadcast %cst_10 : f32 to vector<8x128xf32>
    %28 = arith.mulf %22, %27 : vector<8x128xf32>
    %29 = arith.subf %26, %28 : vector<8x128xf32>
    %cst_11 = arith.constant -0.955336511 : f32
    %30 = vector.broadcast %cst_11 : f32 to vector<8x128xf32>
    %31 = arith.cmpf ogt, %14, %30 : vector<8x128xf32>
    %cst_12 = arith.constant 5.31936359 : f32
    %32 = vector.broadcast %cst_12 : f32 to vector<8x128xf32>
    %33 = arith.subf %24, %32 : vector<8x128xf32>
    %34 = arith.select %31, %29, %33 : vector<8x128xi1>, vector<8x128xf32>
    %35 = tpu.iota {dimensions = array<i32: 1>} : vector<8x128xi32>
    %c128_i32 = arith.constant 128 : i32
    %36 = arith.muli %arg0, %c128_i32 : i32
    %37 = vector.broadcast %36 : i32 to vector<8x128xi32>
    %38 = arith.addi %35, %37 : vector<8x128xi32>
    %39 = vector.broadcast %10 : vector<8x1xi32> to vector<8x128xi32>
    %40 = arith.cmpi eq, %38, %39 : vector<8x128xi32>
    %41 = arith.select %40, %34, %24 : vector<8x128xi1>, vector<8x128xf32>
    %c0_13 = arith.constant 0 : index
    %c0_14 = arith.constant 0 : index
    %42 = vector.load %arg6[%c0_13, %c0_14] : memref<8x128xf32, #tpu.memory_space<vmem>>, vector<8x128xf32>
    tpu.vector_store %arg6[%c0_13, %c0_14], %41 {strides = array<i32>} : memref<8x128xf32, #tpu.memory_space<vmem>>, vector<8x128xf32>,
    return
  }
  func.func @transform_0(%arg0: i32, %arg1: i32) -> (i32, i32) {
    %c0_i32 = arith.constant 0 : i32
    %c0_i32_0 = arith.constant 0 : i32
    %c0_i32_1 = arith.constant 0 : i32
    return %c0_i32, %c0_i32_0 : i32, i32
  }
  func.func @transform_1(%arg0: i32, %arg1: i32) -> (i32, i32) {
    %c0_i32 = arith.constant 0 : i32
    %c0_i32_0 = arith.constant 0 : i32
    %c0_i32_1 = arith.constant 0 : i32
    return %c0_i32, %c0_i32_0 : i32, i32
  }
  func.func @transform_2(%arg0: i32, %arg1: i32) -> (i32, i32) {
    %c0_i32 = arith.constant 0 : i32
    %c0_i32_0 = arith.constant 0 : i32
    return %arg0, %c0_i32 : i32, i32
  }
  func.func @transform_3(%arg0: i32, %arg1: i32) -> (i32, i32) {
    %c0_i32 = arith.constant 0 : i32
    %c0_i32_0 = arith.constant 0 : i32
    %c0_i32_1 = arith.constant 0 : i32
    return %c0_i32, %c0_i32_0 : i32, i32
  }
  func.func @transform_4(%arg0: i32, %arg1: i32) -> (i32, i32) {
    %c0_i32 = arith.constant 0 : i32
    return %arg1, %arg0 : i32, i32
  }
}

</mosaic_0001>

<llo_original>
// kernel: tpu_custom_call.1
$region0: #{tpu_custom_call.1}
  #allocation0 [shape = 'u32[]', space=smem, size = 0x4, offset = 0x4, fixed_abs, tag = 'smem constant byte address 0x4 - core index']
  #allocation1 [shape = 'u32[144,128]{1,0:T(1,128)}', space=vmem, size = 0x12000, scoped, tag = 'internal scratch']
  #allocation2 [shape = 'bf16[128,32]{1,0:T(8,128)(2,1)}', space=vmem, size = 0x8000, scoped, tag = 'scratch operand']
  %s0 = inlined_call_operand.vmem [shape: bf16[8,32], index: 0, kind: input, shape index: {}]
  %s1 = inlined_call_operand.vmem [shape: f32[8,1], index: 1, kind: input, shape index: {}]
  %s2 = inlined_call_operand.vmem [shape: f32[128,32], index: 2, kind: input, shape index: {}]
  %s3 = inlined_call_operand.vmem [shape: s32[8,1], index: 3, kind: input, shape index: {}]
  %s4 = inlined_call_operand.hbm [shape: f32[8,128], index: 4, kind: output, shape index: {}]
  %s5 = sld [smem:[#allocation0]]
  $region30: #{tpu_custom_call.1} parent=0
    _
  %s7 = ssub.s32 1, %s5
  %s8 = scalar_select 0, %s7, %s5
  $region1: #{tpu_custom_call.1} parent=0
    #allocation3 [shape = 'u8[4096]{0}', space=vmem, size = 0x1000, scoped, tag = 'output window, operand 0, single buffered']
    #allocation4 [shape = 's32[1]{0}', space=sflag, size = 0x4, scoped, tag = 'scoped memory for tpu_custom_call.1']
    %9 = vsyncpa [#allocation4], 0
    // Predicated region
    $region2: #{tpu_custom_call.1} parent=1 // pred_check
      _
    $region3: #{tpu_custom_call.1} parent=1 // pred_check_branch
      %11 = sbr.rel (0) target = $region5
    $region4: #{tpu_custom_call.1} parent=1 // pred_region
      _
    $region5: #{tpu_custom_call.1} parent=1 // pred_fallthru
      _
    // Predicated region
    $region6: #{tpu_custom_call.1} parent=1 // pred_check
      _
    $region7: #{tpu_custom_call.1} parent=1 // pred_check_branch
      %13 = sbr.rel (0) target = $region9
    $region8: #{tpu_custom_call.1} parent=1 // pred_region
      _
    $region9: #{tpu_custom_call.1} parent=1 // pred_fallthru
      _
    // Predicated region
    $region10: #{tpu_custom_call.1} parent=1 // pred_check
      _
    $region11: #{tpu_custom_call.1} parent=1 // pred_check_branch
      %15 = sbr.rel (0) target = $region13
    $region12: #{tpu_custom_call.1} parent=1 // pred_region
      _
    $region13: #{tpu_custom_call.1} parent=1 // pred_fallthru
      _
    // Predicated region
    $region14: #{tpu_custom_call.1} parent=1 // pred_check
      _
    $region15: #{tpu_custom_call.1} parent=1 // pred_check_branch
      %17 = sbr.rel (0) target = $region17
    $region16: #{tpu_custom_call.1} parent=1 // pred_region
      _
    $region17: #{tpu_custom_call.1} parent=1 // pred_fallthru
      _
    %p19 = scmp.eq.s32.totalorder 0, 0
    // Predicated region
    $region18: #{tpu_custom_call.1} parent=1 // pred_check
      %p20 = pneg %p19
    $region19: #{tpu_custom_call.1} parent=1 // pred_check_branch
      %22 = sbr.rel (%p20) target = $region21
    $region20: #{tpu_custom_call.1} parent=1 // pred_region
      %v23 = vld [vmem:[%s2] sm:$0xff]
      %v24 = vld [vmem:[%s2 + $0x8] sm:$0xff]
      %v25 = vld [vmem:[%s2 + $0x10] sm:$0xff]
      %v26 = vld [vmem:[%s2 + $0x18] sm:$0xff]
      %v27 = vld [vmem:[%s2 + $0x20] sm:$0xff]
      %v28 = vld [vmem:[%s2 + $0x28] sm:$0xff]
      %v29 = vld [vmem:[%s2 + $0x30] sm:$0xff]
      %v30 = vld [vmem:[%s2 + $0x38] sm:$0xff]
      %v31 = vld [vmem:[%s2 + $0x40] sm:$0xff]
      %v32 = vld [vmem:[%s2 + $0x48] sm:$0xff]
      %v33 = vld [vmem:[%s2 + $0x50] sm:$0xff]
      %v34 = vld [vmem:[%s2 + $0x58] sm:$0xff]
      %v35 = vld [vmem:[%s2 + $0x60] sm:$0xff]
      %v36 = vld [vmem:[%s2 + $0x68] sm:$0xff]
      %v37 = vld [vmem:[%s2 + $0x70] sm:$0xff]
      %v38 = vld [vmem:[%s2 + $0x78] sm:$0xff]
      %v39 = vmul.f32 %v23, %v23
      %v40 = vmul.f32 %v24, %v24
      %v41 = vmul.f32 %v25, %v25
      %v42 = vmul.f32 %v26, %v26
      %v43 = vmul.f32 %v27, %v27
      %v44 = vmul.f32 %v28, %v28
      %v45 = vmul.f32 %v29, %v29
      %v46 = vmul.f32 %v30, %v30
      %v47 = vmul.f32 %v31, %v31
      %v48 = vmul.f32 %v32, %v32
      %v49 = vmul.f32 %v33, %v33
      %v50 = vmul.f32 %v34, %v34
      %v51 = vmul.f32 %v35, %v35
      %v52 = vmul.f32 %v36, %v36
      %v53 = vmul.f32 %v37, %v37
      %v54 = vmul.f32 %v38, %v38
      %vm55 = vcmask 261120
      %v56 = vsel %vm55, %v39, 0.0
      %57 = vadd.xlane.f32.xlu0 %v56
      %v58 = vpop.xlane.xlu0 %57
      %v59 = vsel %vm55, %v40, 0.0
      %60 = vadd.xlane.f32.xlu0 %v59
      %v61 = vpop.xlane.xlu0 %60
      %v62 = vsel %vm55, %v41, 0.0
      %63 = vadd.xlane.f32.xlu0 %v62
      %v64 = vpop.xlane.xlu0 %63
      %v65 = vsel %vm55, %v42, 0.0
      %66 = vadd.xlane.f32.xlu0 %v65
      %v67 = vpop.xlane.xlu0 %66
      %v68 = vsel %vm55, %v43, 0.0
      %69 = vadd.xlane.f32.xlu0 %v68
      %v70 = vpop.xlane.xlu0 %69
      %v71 = vsel %vm55, %v44, 0.0
      %72 = vadd.xlane.f32.xlu0 %v71
      %v73 = vpop.xlane.xlu0 %72
      %v74 = vsel %vm55, %v45, 0.0
      %75 = vadd.xlane.f32.xlu0 %v74
      %v76 = vpop.xlane.xlu0 %75
      %v77 = vsel %vm55, %v46, 0.0
      %78 = vadd.xlane.f32.xlu0 %v77
      %v79 = vpop.xlane.xlu0 %78
      %v80 = vsel %vm55, %v47, 0.0
      %81 = vadd.xlane.f32.xlu0 %v80
      %v82 = vpop.xlane.xlu0 %81
      %v83 = vsel %vm55, %v48, 0.0
      %84 = vadd.xlane.f32.xlu0 %v83
      %v85 = vpop.xlane.xlu0 %84
      %v86 = vsel %vm55, %v49, 0.0
      %87 = vadd.xlane.f32.xlu0 %v86
      %v88 = vpop.xlane.xlu0 %87
      %v89 = vsel %vm55, %v50, 0.0
      %90 = vadd.xlane.f32.xlu0 %v89
      %v91 = vpop.xlane.xlu0 %90
      %v92 = vsel %vm55, %v51, 0.0
      %93 = vadd.xlane.f32.xlu0 %v92
      %v94 = vpop.xlane.xlu0 %93
      %v95 = vsel %vm55, %v52, 0.0
      %96 = vadd.xlane.f32.xlu0 %v95
      %v97 = vpop.xlane.xlu0 %96
      %v98 = vsel %vm55, %v53, 0.0
      %99 = vadd.xlane.f32.xlu0 %v98
      %v100 = vpop.xlane.xlu0 %99
      %v101 = vsel %vm55, %v54, 0.0
      %102 = vadd.xlane.f32.xlu0 %v101
      %v103 = vpop.xlane.xlu0 %102
      %v104 = vmax.f32 %v58, 1e-24
      %v105 = vmax.f32 %v61, 1e-24
      %v106 = vmax.f32 %v64, 1e-24
      %v107 = vmax.f32 %v67, 1e-24
      %v108 = vmax.f32 %v70, 1e-24
      %v109 = vmax.f32 %v73, 1e-24
      %v110 = vmax.f32 %v76, 1e-24
      %v111 = vmax.f32 %v79, 1e-24
      %v112 = vmax.f32 %v82, 1e-24
      %v113 = vmax.f32 %v85, 1e-24
      %v114 = vmax.f32 %v88, 1e-24
      %v115 = vmax.f32 %v91, 1e-24
      %v116 = vmax.f32 %v94, 1e-24
      %v117 = vmax.f32 %v97, 1e-24
      %v118 = vmax.f32 %v100, 1e-24
      %v119 = vmax.f32 %v103, 1e-24
      %v120 = vrsqrt.pop %v104
      %v121 = vrsqrt.pop %v105
      %v122 = vrsqrt.pop %v106
      %v123 = vrsqrt.pop %v107
      %v124 = vrsqrt.pop %v108
      %v125 = vrsqrt.pop %v109
      %v126 = vrsqrt.pop %v110
      %v127 = vrsqrt.pop %v111
      %v128 = vrsqrt.pop %v112
      %v129 = vrsqrt.pop %v113
      %v130 = vrsqrt.pop %v114
      %v131 = vrsqrt.pop %v115
      %v132 = vrsqrt.pop %v116
      %v133 = vrsqrt.pop %v117
      %v134 = vrsqrt.pop %v118
      %v135 = vrsqrt.pop %v119
      %v136 = vmul.f32 %v23, %v120
      %v137 = vmul.f32 %v24, %v121
      %v138 = vmul.f32 %v25, %v122
      %v139 = vmul.f32 %v26, %v123
      %v140 = vmul.f32 %v27, %v124
      %v141 = vmul.f32 %v28, %v125
      %v142 = vmul.f32 %v29, %v126
      %v143 = vmul.f32 %v30, %v127
      %v144 = vmul.f32 %v31, %v128
      %v145 = vmul.f32 %v32, %v129
      %v146 = vmul.f32 %v33, %v130
      %v147 = vmul.f32 %v34, %v131
      %v148 = vmul.f32 %v35, %v132
      %v149 = vmul.f32 %v36, %v133
      %v150 = vmul.f32 %v37, %v134
      %v151 = vmul.f32 %v38, %v135
      %v152 = vpack.c.bf16 %v137, %v136
      %v153 = vpack.c.bf16 %v139, %v138
      %v154 = vpack.c.bf16 %v141, %v140
      %v155 = vpack.c.bf16 %v143, %v142
      %v156 = vpack.c.bf16 %v145, %v144
      %v157 = vpack.c.bf16 %v147, %v146
      %v158 = vpack.c.bf16 %v149, %v148
      %v159 = vpack.c.bf16 %v151, %v150
      %v168 = vunpack.c.l.b16 %v152
      %v169 = vunpack.c.h.b16 %v152
      %v170 = vunpack.c.l.b16 %v153
      %v171 = vunpack.c.h.b16 %v153
      %v172 = vunpack.c.l.b16 %v154
      %v173 = vunpack.c.h.b16 %v154
      %v174 = vunpack.c.l.b16 %v155
      %v175 = vunpack.c.h.b16 %v155
      %v176 = vunpack.c.l.b16 %v156
      %v177 = vunpack.c.h.b16 %v156
      %v178 = vunpack.c.l.b16 %v157
      %v179 = vunpack.c.h.b16 %v157
      %v180 = vunpack.c.l.b16 %v158
      %v181 = vunpack.c.h.b16 %v158
      %v182 = vunpack.c.l.b16 %v159
      %v183 = vunpack.c.h.b16 %v159
      %v184 = vpack.c.b16 %v168, %v168
      %v185 = vpack.c.b16 %v169, %v169
      %v186 = vpack.c.b16 %v170, %v170
      %v187 = vpack.c.b16 %v171, %v171
      %v188 = vpack.c.b16 %v172, %v172
      %v189 = vpack.c.b16 %v173, %v173
      %v190 = vpack.c.b16 %v174, %v174
      %v191 = vpack.c.b16 %v175, %v175
      %v192 = vpack.c.b16 %v176, %v176
      %v193 = vpack.c.b16 %v177, %v177
      %v194 = vpack.c.b16 %v178, %v178
      %v195 = vpack.c.b16 %v179, %v179
      %v196 = vpack.c.b16 %v180, %v180
      %v197 = vpack.c.b16 %v181, %v181
      %v198 = vpack.c.b16 %v182, %v182
      %v199 = vpack.c.b16 %v183, %v183
      %vm216 = vcmask 257024
      %217 = vst.msk [vmem:[#allocation2] sm:$0xf] %vm216, %v184
      %218 = vst.msk [vmem:[#allocation2 + $0x4] sm:$0xf] %vm216, %v185
      %219 = vst.msk [vmem:[#allocation2 + $0x8] sm:$0xf] %vm216, %v186
      %220 = vst.msk [vmem:[#allocation2 + $0xc] sm:$0xf] %vm216, %v187
      %221 = vst.msk [vmem:[#allocation2 + $0x10] sm:$0xf] %vm216, %v188
      %222 = vst.msk [vmem:[#allocation2 + $0x14] sm:$0xf] %vm216, %v189
      %223 = vst.msk [vmem:[#allocation2 + $0x18] sm:$0xf] %vm216, %v190
      %224 = vst.msk [vmem:[#allocation2 + $0x1c] sm:$0xf] %vm216, %v191
      %225 = vst.msk [vmem:[#allocation2 + $0x20] sm:$0xf] %vm216, %v192
      %226 = vst.msk [vmem:[#allocation2 + $0x24] sm:$0xf] %vm216, %v193
      %227 = vst.msk [vmem:[#allocation2 + $0x28] sm:$0xf] %vm216, %v194
      %228 = vst.msk [vmem:[#allocation2 + $0x2c] sm:$0xf] %vm216, %v195
      %229 = vst.msk [vmem:[#allocation2 + $0x30] sm:$0xf] %vm216, %v196
      %230 = vst.msk [vmem:[#allocation2 + $0x34] sm:$0xf] %vm216, %v197
      %231 = vst.msk [vmem:[#allocation2 + $0x38] sm:$0xf] %vm216, %v198
      %232 = vst.msk [vmem:[#allocation2 + $0x3c] sm:$0xf] %vm216, %v199
    $region21: #{tpu_custom_call.1} parent=1 // pred_fallthru
      _
    %s233 = smul.u32 0, 8
    %s234 = sshra.s32 %s233, 3
    %s235 = sand.u32 %s233, 7
    %s236 = smul.addr %s234, 4
    %s237 = scalar_lea.vmem %s0, %s236
    %v238 = vld [vmem:[%s237] sm:$0xf]
    %s239 = scalar_lea.vmem %s1, %s233
    %v240 = vld [vmem:[%s239] sm:$0xff]
    %s241 = scalar_lea.vmem %s3, %s233
    %v242 = vld [vmem:[%s241] sm:$0xff]
    %v243 = vld [vmem:[#allocation2] sm:$0xf]
    %v244 = vld [vmem:[#allocation2 + $0x4] sm:$0xf]
    %v245 = vld [vmem:[#allocation2 + $0x8] sm:$0xf]
    %v246 = vld [vmem:[#allocation2 + $0xc] sm:$0xf]
    %v247 = vld [vmem:[#allocation2 + $0x10] sm:$0xf]
    %v248 = vld [vmem:[#allocation2 + $0x14] sm:$0xf]
    %v249 = vld [vmem:[#allocation2 + $0x18] sm:$0xf]
    %v250 = vld [vmem:[#allocation2 + $0x1c] sm:$0xf]
    %v251 = vld [vmem:[#allocation2 + $0x20] sm:$0xf]
    %v252 = vld [vmem:[#allocation2 + $0x24] sm:$0xf]
    %v253 = vld [vmem:[#allocation2 + $0x28] sm:$0xf]
    %v254 = vld [vmem:[#allocation2 + $0x2c] sm:$0xf]
    %v255 = vld [vmem:[#allocation2 + $0x30] sm:$0xf]
    %v256 = vld [vmem:[#allocation2 + $0x34] sm:$0xf]
    %v257 = vld [vmem:[#allocation2 + $0x38] sm:$0xf]
    %v258 = vld [vmem:[#allocation2 + $0x3c] sm:$0xf]
    %v275 = vunpack.c.l.b16 %v243
    %v276 = vunpack.c.l.b16 %v244
    %v277 = vunpack.c.l.b16 %v245
    %v278 = vunpack.c.l.b16 %v246
    %v279 = vunpack.c.l.b16 %v247
    %v280 = vunpack.c.l.b16 %v248
    %v281 = vunpack.c.l.b16 %v249
    %v282 = vunpack.c.l.b16 %v250
    %v283 = vunpack.c.l.b16 %v251
    %v284 = vunpack.c.l.b16 %v252
    %v285 = vunpack.c.l.b16 %v253
    %v286 = vunpack.c.l.b16 %v254
    %v287 = vunpack.c.l.b16 %v255
    %v288 = vunpack.c.l.b16 %v256
    %v289 = vunpack.c.l.b16 %v257
    %v290 = vunpack.c.l.b16 %v258
    %v291 = vpack.c.b16 %v276, %v275
    %v292 = vpack.c.b16 %v278, %v277
    %v293 = vpack.c.b16 %v280, %v279
    %v294 = vpack.c.b16 %v282, %v281
    %v295 = vpack.c.b16 %v284, %v283
    %v296 = vpack.c.b16 %v286, %v285
    %v297 = vpack.c.b16 %v288, %v287
    %v298 = vpack.c.b16 %v290, %v289
    %vm299 = vcmask 261120
    %v301 = vsel %vm299, %v238, 0
    %v304 = vsel %vm299, %v291, 0
    %v307 = vsel %vm299, %v292, 0
    %v310 = vsel %vm299, %v293, 0
    %v313 = vsel %vm299, %v294, 0
    %v316 = vsel %vm299, %v295, 0
    %v319 = vsel %vm299, %v296, 0
    %v322 = vsel %vm299, %v297, 0
    %v325 = vsel %vm299, %v298, 0
    %327 = vmatprep.subr.bf16.mxu0 0
    %328 = vmatpush1.bf16.xpose.msra.mxu0 %v325
    %329 = vmatprep.subr.bf16.mxu0 0
    %330 = vmatpush1.bf16.xpose.msra.mxu0 %v322
    %331 = vmatprep.subr.bf16.mxu0 0
    %332 = vmatpush1.bf16.xpose.msra.mxu0 %v319
    %333 = vmatprep.subr.bf16.mxu0 0
    %334 = vmatpush1.bf16.xpose.msra.mxu0 %v316
    %335 = vmatprep.subr.bf16.mxu0 0
    %336 = vmatpush1.bf16.xpose.msra.mxu0 %v313
    %337 = vmatprep.subr.bf16.mxu0 0
    %338 = vmatpush1.bf16.xpose.msra.mxu0 %v310
    %339 = vmatprep.subr.bf16.mxu0 0
    %340 = vmatpush1.bf16.xpose.msra.mxu0 %v307
    %341 = vmatprep.subr.bf16.mxu0 0
    %342 = vmatpush1.bf16.xpose.msra.mxu0 %v304
    %343 = vmatprep.subr.bf16.mxu0 0
    %344 = vmatpush2.bf16.xpose.msra.mxu0 0
    %345 = vmatprep.subr.bf16.mxu0 0
    %346 = vmatpush2.bf16.xpose.msra.mxu0 0
    %347 = vmatprep.subr.bf16.mxu0 0
    %348 = vmatpush2.bf16.xpose.msra.mxu0 0
    %349 = vmatprep.subr.bf16.mxu0 0
    %350 = vmatpush2.bf16.xpose.msra.mxu0 0
    %351 = vmatprep.subr.bf16.mxu0 0
    %352 = vmatpush2.bf16.xpose.msra.mxu0 0
    %353 = vmatprep.subr.bf16.mxu0 0
    %354 = vmatpush2.bf16.xpose.msra.mxu0 0
    %355 = vmatprep.subr.bf16.mxu0 0
    %356 = vmatpush2.bf16.xpose.msra.mxu0 0
    %357 = vmatprep.subr.bf16.mxu0 0
    %358 = vmatpush2.bf16.xpose.msra.mxu0 0
    %359 = vmatprep.mubr.bf16.mxu0 0
    %360 = vmatmul.mubr.bf16.gmra.mxu0 %v301
    %v361 = vpop.f32.mrf.mxu0
    %v362 = vadd.f32 0.0, %v361
    %v363 = vpop.f32.mrf.mxu0
    %v364 = vpop.f32.mrf.mxu0
    %v365 = vpop.f32.mrf.mxu0
    %366 = vdwg.mxu0
    %368 = vset.pattern.permute.xlu0 0
    %369 = vperm.xlu0 %368, %v240
    %v370 = vpop.permute.xlu0 %369
    %v372 = vmul.f32 %v362, %v370
    %v373 = vmul.f32 %v372, %v372
    %v374 = vsub.f32 1.000001, %v373
    %v375 = vmax.f32 %v374, 0.0
    %v376 = vmin.f32 %v375, 1.0
    %v377 = vrsqrt.pop %v376
    %v378 = vmul.f32 %v376, %v377
    %vm379 = vcmp.eq.f32.partialorder %v376, inf
    %v380 = vsel %vm379, %v376, %v378
    %vm381 = vcmp.eq.f32.partialorder %v376, 0.0
    %v382 = vand.u32 %v376, 2147483648
    %v383 = vsel %vm381, %v382, %v380
    %v384 = vmul.f32 %v372, 60.0
    %v385 = vmul.f32 %v372, 57.32019
    %v386 = vmul.f32 %v383, 17.731213
    %v387 = vsub.f32 %v385, %v386
    %vm388 = vcmp.gt.f32.partialorder %v372, -0.9553365
    %v389 = vsub.f32 %v384, 5.3193636
    %v390 = vsel %vm388, %v387, %v389
    %v391 = vlaneseq
    %v392 = vand.u32 %v391, 127
    %s393 = smul.u32 0, 128
    %v394 = vstv %s393
    %v395 = vadd.s32 %v392, %v394
    %396 = vset.pattern.permute.xlu0 0
    %397 = vperm.xlu0 %396, %v242
    %v398 = vpop.permute.xlu0 %397
    %vm399 = vcmp.eq.s32.totalorder %v395, %v398
    %v400 = vsel %vm399, %v390, %v384
    %401 = vst [vmem:[#allocation3] sm:$0xff] %v400
    // Predicated region
    $region22: #{tpu_custom_call.1} parent=1 // pred_check
      _
    $region23: #{tpu_custom_call.1} parent=1 // pred_check_branch
      %403 = sbr.rel (0) target = $region25
    $region24: #{tpu_custom_call.1} parent=1 // pred_region
      %s405 = ssub.s32 128, 128
      %406 = vsyncadd [#allocation4], %s405
      %s408 = sshll.u32 [#allocation3], 4
      %s409 = int_to_ptr.vmem [resolvable:$true] %s408
      %411 = dma.vmem_to_hbm [thread:$0]  %s409, 128, %s4, [#allocation4]
    $region25: #{tpu_custom_call.1} parent=1 // pred_fallthru
      _
    // Predicated region
    $region26: #{tpu_custom_call.1} parent=1 // pred_check
      _
    $region27: #{tpu_custom_call.1} parent=1 // pred_check_branch
      %413 = sbr.rel (0) target = $region29
    $region28: #{tpu_custom_call.1} parent=1 // pred_region
      %414 = dma.done [#allocation4], 128
    $region29: #{tpu_custom_call.1} parent=1 // pred_fallthru
      _
    %415 = vsyncpa [#allocation4], 1

</llo_original>
